<compile_context>
chip_gen: v7x
topology: tpu7x:2x2x1
jax: 0.10.0
libtpu: 0.0.40
codegen_flags: <defaults>
</compile_context>

<pallas_src>
import jax
import jax.numpy as jnp
from jax.experimental import pallas as pl
from jax.experimental.pallas import tpu as pltpu


def _round_up(x, m):
    return (x + m - 1) // m * m


# ---------------------------------------------------------------------------
# Pallas kernels
# ---------------------------------------------------------------------------
def _crelu_complex_matmul_kernel(xr_ref, xi_ref, wr_ref, wi_ref, ws_ref,
                                 br_ref, bi_ref, or_ref, oi_ref):
    """Complex conv (im2col matmul) + bias + CReLU for one (M, Cout) tile.

    Gauss / 3-matmul complex product:
        t1 = xr @ wr ; t2 = xi @ wi ; t3 = (xr + xi) @ (wr + wi)
        real = t1 - t2 ; imag = t3 - t1 - t2
    Inputs are bf16, accumulation / epilogue in f32 on the VPU.
    """
    xr = xr_ref[...]
    xi = xi_ref[...]
    t1 = jnp.dot(xr, wr_ref[...], preferred_element_type=jnp.float32)
    t2 = jnp.dot(xi, wi_ref[...], preferred_element_type=jnp.float32)
    t3 = jnp.dot(xr + xi, ws_ref[...], preferred_element_type=jnp.float32)
    real = t1 - t2 + br_ref[...]
    imag = t3 - t1 - t2 + bi_ref[...]
    # CReLU: ReLU on real and imaginary parts independently.
    or_ref[...] = jnp.maximum(real, 0.0).astype(or_ref.dtype)
    oi_ref[...] = jnp.maximum(imag, 0.0).astype(oi_ref.dtype)


def _complex_maxpool_kernel(pr_ref, pi_ref, or_ref, oi_ref):
    """Max over the stacked k*k window axis (axis 0), lane-dense (tm, C) out."""
    or_ref[...] = jnp.max(pr_ref[...], axis=0)
    oi_ref[...] = jnp.max(pi_ref[...], axis=0)


# ---------------------------------------------------------------------------
# Glue (plain JAX): im2col / padding / reshapes
# ---------------------------------------------------------------------------
def _im2col_nhwc(x, k, stride, padding):
    N, H, W, C = x.shape
    if padding:
        x = jnp.pad(x, ((0, 0), (padding, padding), (padding, padding), (0, 0)))
    Hp, Wp = x.shape[1], x.shape[2]
    Ho = (Hp - k) // stride + 1
    Wo = (Wp - k) // stride + 1
    cols = []
    for dy in range(k):
        for dx in range(k):
            cols.append(x[:, dy:dy + stride * (Ho - 1) + 1:stride,
                          dx:dx + stride * (Wo - 1) + 1:stride, :])
    patches = jnp.stack(cols, axis=3)            # (N, Ho, Wo, k*k, C)
    return patches.reshape(N * Ho * Wo, k * k * C), (N, Ho, Wo)
    # TODO(synk): im2col still materialized host-side (not fused into the
    # kernel as a k*k reduction grid axis); stride-2 shifted slices are not
    # expressible with a plain BlockSpec index_map.


def crelu_conv2d(xr, xi, wr, wi, br, bi, *, kernel_size, stride=1, padding=0,
                 out_dtype=jnp.float32):
    """Complex conv + CReLU.  xr, xi: NHWC.  wr/wi: (k*k*Cin, Cout).  NHWC out."""
    k = kernel_size
    ar, shp = _im2col_nhwc(xr, k, stride, padding)
    ai, _ = _im2col_nhwc(xi, k, stride, padding)
    M, K = ar.shape
    Cout = wr.shape[1]

    # Tile sizes: M-tiles of <=256 rows (bf16-friendly multiple of 16), Cout
    # tiles of 128 lanes.  Zero padding contributes nothing to the matmul.
    tn = 128
    tm = min(256, _round_up(M, 16))
    Mp = _round_up(M, tm)
    Kp = _round_up(K, 128)
    Np = _round_up(Cout, tn)

    # bf16 MXU inputs; f32 accumulation inside the kernel.
    ar = jnp.pad(ar, ((0, Mp - M), (0, Kp - K))).astype(jnp.bfloat16)
    ai = jnp.pad(ai, ((0, Mp - M), (0, Kp - K))).astype(jnp.bfloat16)
    wrp = jnp.pad(wr, ((0, Kp - K), (0, Np - Cout))).astype(jnp.bfloat16)
    wip = jnp.pad(wi, ((0, Kp - K), (0, Np - Cout))).astype(jnp.bfloat16)
    wsp = jnp.pad(wr + wi, ((0, Kp - K), (0, Np - Cout))).astype(jnp.bfloat16)
    brp = jnp.pad(br, (0, Np - Cout)).reshape(1, Np).astype(jnp.float32)
    bip = jnp.pad(bi, (0, Np - Cout)).reshape(1, Np).astype(jnp.float32)

    # M outer / Cout inner: x tile index depends only on i, so it stays
    # VMEM-resident across the inner Cout sweep; weights/bias stream per j.
    grid = (Mp // tm, Np // tn)
    x_spec = pl.BlockSpec((tm, Kp), lambda i, j: (i, 0))
    w_spec = pl.BlockSpec((Kp, tn), lambda i, j: (0, j))
    b_spec = pl.BlockSpec((1, tn), lambda i, j: (0, j))
    o_spec = pl.BlockSpec((tm, tn), lambda i, j: (i, j))

    out_r, out_i = pl.pallas_call(
        _crelu_complex_matmul_kernel,
        out_shape=(jax.ShapeDtypeStruct((Mp, Np), out_dtype),
                   jax.ShapeDtypeStruct((Mp, Np), out_dtype)),
        grid_spec=pltpu.PrefetchScalarGridSpec(
            num_scalar_prefetch=0,
            grid=grid,
            in_specs=[x_spec, x_spec, w_spec, w_spec, w_spec, b_spec, b_spec],
            out_specs=[o_spec, o_spec]),
        compiler_params=pltpu.CompilerParams(
            dimension_semantics=("parallel", "parallel"),
            vmem_limit_bytes=64 * 1024 * 1024),
    )(ar, ai, wrp, wip, wsp, brp, bip)

    N, Ho, Wo = shp
    out_r = out_r[:M, :Cout].reshape(N, Ho, Wo, Cout)
    out_i = out_i[:M, :Cout].reshape(N, Ho, Wo, Cout)
    return out_r, out_i


def complex_max_pool2d(xr, xi, *, kernel_size=3, stride=2):
    """ComplexMaxPool2d: independent max-pool on real/imag.  xr, xi: NHWC."""
    N, H, W, C = xr.shape
    k, s = kernel_size, stride
    Ho = (H - k) // s + 1
    Wo = (W - k) // s + 1
    M = N * Ho * Wo

    def windows(x):
        cols = []
        for dy in range(k):
            for dx in range(k):
                cols.append(x[:, dy:dy + s * (Ho - 1) + 1:s,
                              dx:dx + s * (Wo - 1) + 1:s, :])
        # (k*k, N, Ho, Wo, C) -> (k*k, M, C): channels kept in the lane dim.
        return jnp.stack(cols, axis=0).reshape(k * k, M, C)

    pr = windows(xr.astype(jnp.float32))
    pi = windows(xi.astype(jnp.float32))

    tm = min(512, _round_up(M, 8))
    Mp = _round_up(M, tm)
    Cp = _round_up(C, 128)
    pr = jnp.pad(pr, ((0, 0), (0, Mp - M), (0, Cp - C)))
    pi = jnp.pad(pi, ((0, 0), (0, Mp - M), (0, Cp - C)))

    grid = (Mp // tm,)
    in_spec = pl.BlockSpec((k * k, tm, Cp), lambda i: (0, i, 0))
    out_spec = pl.BlockSpec((tm, Cp), lambda i: (i, 0))

    out_r, out_i = pl.pallas_call(
        _complex_maxpool_kernel,
        out_shape=(jax.ShapeDtypeStruct((Mp, Cp), jnp.float32),
                   jax.ShapeDtypeStruct((Mp, Cp), jnp.float32)),
        grid_spec=pltpu.PrefetchScalarGridSpec(
            num_scalar_prefetch=0,
            grid=grid,
            in_specs=[in_spec, in_spec],
            out_specs=[out_spec, out_spec]),
        compiler_params=pltpu.CompilerParams(
            dimension_semantics=("parallel",)),
    )(pr, pi)

    out_r = out_r[:M, :C].reshape(N, Ho, Wo, C)
    out_i = out_i[:M, :C].reshape(N, Ho, Wo, C)
    return out_r, out_i


# ---------------------------------------------------------------------------
# Parameters (deterministic synthetic init) and the module
# ---------------------------------------------------------------------------
def init_crelu_conv_params(key, cin, cout, k):
    # weight layout (k*k*cin, cout) == PyTorch (cout, cin, k, k) permuted to
    # (k, k, cin, cout) and flattened — matches the im2col column ordering above.
    k1, k2, k3, k4 = jax.random.split(key, 4)
    scale = 1.0 / jnp.sqrt(jnp.float32(cin * k * k))
    wr = jax.random.normal(k1, (k * k * cin, cout), jnp.float32) * scale
    wi = jax.random.normal(k2, (k * k * cin, cout), jnp.float32) * scale
    br = jax.random.normal(k3, (cout,), jnp.float32) * 0.01
    bi = jax.random.normal(k4, (cout,), jnp.float32) * 0.01
    return dict(wr=wr, wi=wi, br=br, bi=bi)


class ComplexInceptionB:
    def __init__(self, in_channels, key):
        keys = jax.random.split(key, 4)
        self.p_b3 = init_crelu_conv_params(keys[0], in_channels, 384, 3)
        self.p_d1 = init_crelu_conv_params(keys[1], in_channels, 64, 1)
        self.p_d2 = init_crelu_conv_params(keys[2], 64, 96, 3)
        self.p_d3 = init_crelu_conv_params(keys[3], 96, 96, 3)

    def __call__(self, xr_nchw, xi_nchw):
        # NCHW -> NHWC for the kernels, NHWC -> NCHW on the way out.
        xr = jnp.transpose(xr_nchw, (0, 2, 3, 1))
        xi = jnp.transpose(xi_nchw, (0, 2, 3, 1))

        b3r, b3i = crelu_conv2d(xr, xi, **self.p_b3, kernel_size=3, stride=2)

        # Intermediate d-branch activations emitted in bf16 to halve inter-stage
        # HBM traffic (next matmul consumes bf16 anyway); final stage is f32.
        dr, di = crelu_conv2d(xr, xi, **self.p_d1, kernel_size=1,
                              out_dtype=jnp.bfloat16)
        dr, di = crelu_conv2d(dr, di, **self.p_d2, kernel_size=3, padding=1,
                              out_dtype=jnp.bfloat16)
        dr, di = crelu_conv2d(dr, di, **self.p_d3, kernel_size=3, stride=2)

        pr, pi = complex_max_pool2d(xr, xi, kernel_size=3, stride=2)

        out_r = jnp.concatenate([b3r, dr, pr], axis=-1)   # channel cat (NHWC)
        out_i = jnp.concatenate([b3i, di, pi], axis=-1)
        return (jnp.transpose(out_r, (0, 3, 1, 2)),
                jnp.transpose(out_i, (0, 3, 1, 2)))


if __name__ == "__main__":
    key = jax.random.PRNGKey(0)
    kx, kp = jax.random.split(key)
    N, C, H, W = 2, 4, 16, 16
    x_real = jax.random.normal(jax.random.fold_in(kx, 0), (N, C, H, W), jnp.float32)
    x_im = jax.random.normal(jax.random.fold_in(kx, 1), (N, C, H, W), jnp.float32)

    model = ComplexInceptionB(C, kp)
    out_r, out_i = model(x_real, x_im)
    jax.block_until_ready((out_r, out_i))

    expected = (N, 384 + 96 + C, (H - 3) // 2 + 1, (W - 3) // 2 + 1)
    assert out_r.shape == expected, (out_r.shape, expected)
    assert out_i.shape == expected, (out_i.shape, expected)
    assert out_r.dtype == jnp.float32 and out_i.dtype == jnp.float32
    print("KERNEL_OK")
</pallas_src>

<mosaic_0001>
module attributes {stable_mosaic.version = 11 : i64} {
  func.func @_crelu_complex_matmul_kernel(%arg0: i32, %arg1: i32, %arg2: memref<112x128xbf16, #tpu.memory_space<vmem>>, %arg3: memref<112x128xbf16, #tpu.memory_space<vmem>>, %arg4: memref<128x128xbf16, #tpu.memory_space<vmem>>, %arg5: memref<128x128xbf16, #tpu.memory_space<vmem>>, %arg6: memref<128x128xbf16, #tpu.memory_space<vmem>>, %arg7: memref<1x128xf32, #tpu.memory_space<vmem>>, %arg8: memref<1x128xf32, #tpu.memory_space<vmem>>, %arg9: memref<112x128xf32, #tpu.memory_space<vmem>>, %arg10: memref<112x128xf32, #tpu.memory_space<vmem>>) attributes {dimension_semantics = [#tpu.dimension_semantics<parallel>, #tpu.dimension_semantics<parallel>], iteration_bounds = array<i64: 1, 3>, scalar_prefetch = 0 : i64, scratch_operands = 0 : i64, tpu.core_type = #tpu.core_type<tc>, window_params = [{transform_indices = @transform_0, window_bounds = array<i64: 112, 128>}, {transform_indices = @transform_1, window_bounds = array<i64: 112, 128>}, {transform_indices = @transform_2, window_bounds = array<i64: 128, 128>}, {transform_indices = @transform_3, window_bounds = array<i64: 128, 128>}, {transform_indices = @transform_4, window_bounds = array<i64: 128, 128>}, {transform_indices = @transform_5, window_bounds = array<i64: 1, 128>}, {transform_indices = @transform_6, window_bounds = array<i64: 1, 128>}, {transform_indices = @transform_7, window_bounds = array<i64: 112, 128>}, {transform_indices = @transform_8, window_bounds = array<i64: 112, 128>}]} {
    %c0 = arith.constant 0 : index
    %c0_0 = arith.constant 0 : index
    %0 = vector.load %arg2[%c0, %c0_0] : memref<112x128xbf16, #tpu.memory_space<vmem>>, vector<112x128xbf16>
    %c0_1 = arith.constant 0 : index
    %c0_2 = arith.constant 0 : index
    %1 = vector.load %arg3[%c0_1, %c0_2] : memref<112x128xbf16, #tpu.memory_space<vmem>>, vector<112x128xbf16>
    %c0_3 = arith.constant 0 : index
    %c0_4 = arith.constant 0 : index
    %2 = vector.load %arg4[%c0_3, %c0_4] : memref<128x128xbf16, #tpu.memory_space<vmem>>, vector<128x128xbf16>
    %cst = arith.constant dense<0.000000e+00> : vector<112x128xf32>
    %3 = tpu.matmul %0, %2, %cst {dimension_numbers = #tpu.dot_dimension_numbers<[1], [0], [0], [1], [0, 0, 1, 1], [], []>} : vector<112x128xbf16>, vector<128x128xbf16>, vector<112x128xf32> -> vector<112x128xf32>
    %c0_5 = arith.constant 0 : index
    %c0_6 = arith.constant 0 : index
    %4 = vector.load %arg5[%c0_5, %c0_6] : memref<128x128xbf16, #tpu.memory_space<vmem>>, vector<128x128xbf16>
    %cst_7 = arith.constant dense<0.000000e+00> : vector<112x128xf32>
    %5 = tpu.matmul %1, %4, %cst_7 {dimension_numbers = #tpu.dot_dimension_numbers<[1], [0], [0], [1], [0, 0, 1, 1], [], []>} : vector<112x128xbf16>, vector<128x128xbf16>, vector<112x128xf32> -> vector<112x128xf32>
    %6 = arith.addf %0, %1 : vector<112x128xbf16>
    %c0_8 = arith.constant 0 : index
    %c0_9 = arith.constant 0 : index
    %7 = vector.load %arg6[%c0_8, %c0_9] : memref<128x128xbf16, #tpu.memory_space<vmem>>, vector<128x128xbf16>
    %cst_10 = arith.constant dense<0.000000e+00> : vector<112x128xf32>
    %8 = tpu.matmul %6, %7, %cst_10 {dimension_numbers = #tpu.dot_dimension_numbers<[1], [0], [0], [1], [0, 0, 1, 1], [], []>} : vector<112x128xbf16>, vector<128x128xbf16>, vector<112x128xf32> -> vector<112x128xf32>
    %9 = arith.subf %3, %5 : vector<112x128xf32>
    %c0_11 = arith.constant 0 : index
    %c0_12 = arith.constant 0 : index
    %10 = vector.load %arg7[%c0_11, %c0_12] : memref<1x128xf32, #tpu.memory_space<vmem>>, vector<1x128xf32>
    %11 = vector.broadcast %10 : vector<1x128xf32> to vector<112x128xf32>
    %12 = arith.addf %9, %11 : vector<112x128xf32>
    %13 = arith.subf %8, %3 : vector<112x128xf32>
    %14 = arith.subf %13, %5 : vector<112x128xf32>
    %c0_13 = arith.constant 0 : index
    %c0_14 = arith.constant 0 : index
    %15 = vector.load %arg8[%c0_13, %c0_14] : memref<1x128xf32, #tpu.memory_space<vmem>>, vector<1x128xf32>
    %16 = vector.broadcast %15 : vector<1x128xf32> to vector<112x128xf32>
    %17 = arith.addf %14, %16 : vector<112x128xf32>
    %cst_15 = arith.constant 0.000000e+00 : f32
    %18 = vector.broadcast %cst_15 : f32 to vector<112x128xf32>
    %19 = arith.maximumf %12, %18 : vector<112x128xf32>
    %c0_16 = arith.constant 0 : index
    %c0_17 = arith.constant 0 : index
    %20 = vector.load %arg9[%c0_16, %c0_17] : memref<112x128xf32, #tpu.memory_space<vmem>>, vector<112x128xf32>
    tpu.vector_store %arg9[%c0_16, %c0_17], %19 {strides = array<i32>} : memref<112x128xf32, #tpu.memory_space<vmem>>, vector<112x128xf32>,
    %cst_18 = arith.constant 0.000000e+00 : f32
    %21 = vector.broadcast %cst_18 : f32 to vector<112x128xf32>
    %22 = arith.maximumf %17, %21 : vector<112x128xf32>
    %c0_19 = arith.constant 0 : index
    %c0_20 = arith.constant 0 : index
    %23 = vector.load %arg10[%c0_19, %c0_20] : memref<112x128xf32, #tpu.memory_space<vmem>>, vector<112x128xf32>
    tpu.vector_store %arg10[%c0_19, %c0_20], %22 {strides = array<i32>} : memref<112x128xf32, #tpu.memory_space<vmem>>, vector<112x128xf32>,
    return
  }
  func.func @transform_0(%arg0: i32, %arg1: i32) -> (i32, i32) {
    %c0_i32 = arith.constant 0 : i32
    %c0_i32_0 = arith.constant 0 : i32
    return %arg0, %c0_i32 : i32, i32
  }
  func.func @transform_1(%arg0: i32, %arg1: i32) -> (i32, i32) {
    %c0_i32 = arith.constant 0 : i32
    %c0_i32_0 = arith.constant 0 : i32
    return %arg0, %c0_i32 : i32, i32
  }
  func.func @transform_2(%arg0: i32, %arg1: i32) -> (i32, i32) {
    %c0_i32 = arith.constant 0 : i32
    %c0_i32_0 = arith.constant 0 : i32
    return %c0_i32, %arg1 : i32, i32
  }
  func.func @transform_3(%arg0: i32, %arg1: i32) -> (i32, i32) {
    %c0_i32 = arith.constant 0 : i32
    %c0_i32_0 = arith.constant 0 : i32
    return %c0_i32, %arg1 : i32, i32
  }
  func.func @transform_4(%arg0: i32, %arg1: i32) -> (i32, i32) {
    %c0_i32 = arith.constant 0 : i32
    %c0_i32_0 = arith.constant 0 : i32
    return %c0_i32, %arg1 : i32, i32
  }
  func.func @transform_5(%arg0: i32, %arg1: i32) -> (i32, i32) {
    %c0_i32 = arith.constant 0 : i32
    %c0_i32_0 = arith.constant 0 : i32
    return %c0_i32, %arg1 : i32, i32
  }
  func.func @transform_6(%arg0: i32, %arg1: i32) -> (i32, i32) {
    %c0_i32 = arith.constant 0 : i32
    %c0_i32_0 = arith.constant 0 : i32
    return %c0_i32, %arg1 : i32, i32
  }
  func.func @transform_7(%arg0: i32, %arg1: i32) -> (i32, i32) {
    %c0_i32 = arith.constant 0 : i32
    return %arg0, %arg1 : i32, i32
  }
  func.func @transform_8(%arg0: i32, %arg1: i32) -> (i32, i32) {
    %c0_i32 = arith.constant 0 : i32
    return %arg0, %arg1 : i32, i32
  }
}

</mosaic_0001>

<llo_original>
// kernel: tpu_custom_call.1
$region0: #{tpu_custom_call.1}
  #allocation0 [shape = 'u32[]', space=smem, size = 0x4, offset = 0x4, fixed_abs, tag = 'smem constant byte address 0x4 - core index']
  #allocation1 [shape = 'u32[144,128]{1,0:T(1,128)}', space=vmem, size = 0x12000, scoped, tag = 'internal scratch']
  %s0 = inlined_call_operand.hbm [shape: bf16[112,128], index: 0, kind: input, shape index: {}]
  %s1 = inlined_call_operand.hbm [shape: bf16[112,128], index: 1, kind: input, shape index: {}]
  %s2 = inlined_call_operand.hbm [shape: bf16[128,384], index: 2, kind: input, shape index: {}]
  %s3 = inlined_call_operand.hbm [shape: bf16[128,384], index: 3, kind: input, shape index: {}]
  %s4 = inlined_call_operand.hbm [shape: bf16[128,384], index: 4, kind: input, shape index: {}]
  %s5 = inlined_call_operand.hbm [shape: f32[1,384], index: 5, kind: input, shape index: {}]
  %s6 = inlined_call_operand.hbm [shape: f32[1,384], index: 6, kind: input, shape index: {}]
  %s7 = inlined_call_operand.hbm [shape: f32[112,384], index: 7, kind: output, shape index: {0}]
  %s8 = inlined_call_operand.hbm [shape: f32[112,384], index: 8, kind: output, shape index: {1}]
  %9 = xla_tuple %s7, %s8
  %s10 = sld [smem:[#allocation0]]
  $region97: #{tpu_custom_call.1} parent=0
    _
  %s12 = ssub.s32 1, %s10
  %s13 = scalar_select 0, %s12, %s10
  $region1: #{tpu_custom_call.1} parent=0
    #allocation2 [shape = 'u8[28672]{0}', space=vmem, size = 0x7000, scoped, tag = 'input window, operand 0, single buffered']
    #allocation3 [shape = 's32[2]{0}', space=sflag, size = 0x8, scoped, tag = 'scoped memory for tpu_custom_call.1']
    #allocation4 [shape = 's32[2]{0}', space=sflag, size = 0x8, scoped, tag = 'scoped memory for tpu_custom_call.1']
    #allocation5 [shape = 'u8[28672]{0}', space=vmem, size = 0x7000, scoped, tag = 'input window, operand 1, single buffered']
    #allocation6 [shape = 's32[1]{0}', space=sflag, size = 0x4, scoped, tag = 'scoped memory for tpu_custom_call.1']
    #allocation7 [shape = 'u8[65536]{0}', space=vmem, size = 0x10000, scoped, tag = 'input window, operand 2']
    #allocation8 [shape = 'u8[65536]{0}', space=vmem, size = 0x10000, scoped, tag = 'input window, operand 3']
    #allocation9 [shape = 'u8[65536]{0}', space=vmem, size = 0x10000, scoped, tag = 'input window, operand 4']
    #allocation10 [shape = 'u8[1024]{0}', space=vmem, size = 0x400, scoped, tag = 'input window, operand 5']
    #allocation11 [shape = 'u8[1024]{0}', space=vmem, size = 0x400, scoped, tag = 'input window, operand 6']
    #allocation12 [shape = 'u8[114688]{0}', space=vmem, size = 0x1c000, scoped, tag = 'output window, operand 0']
    #allocation13 [shape = 'u8[114688]{0}', space=vmem, size = 0x1c000, scoped, tag = 'output window, operand 1']
    #allocation14 [shape = 's32[2]{0}', space=sflag, size = 0x8, scoped, tag = 'scoped memory for tpu_custom_call.1']
    %14 = vsyncpa [#allocation3], 0
    %15 = vsyncpa [#allocation6], 0
    %16 = vsyncpa [#allocation4], 0
    %s17 = scalar_lea.sflag [#allocation4], 1
    %18 = vsyncpa %s17, 0
    %19 = vsyncpa [#allocation14], 0
    %s20 = scalar_lea.sflag [#allocation14], 1
    %21 = vsyncpa %s20, 0
    loop: start=0, step=1, limit=5
    $region2: #{tpu_custom_call.1} parent=1 // loop_pre_header
      _
    $region3: #{tpu_custom_call.1} parent=1 // loop_header
      %s23 = sphi 0, %s27
      %p24 = scmp.ge.s32.totalorder %s23, 5
      %s30 = sphi 0, %s42
      %s31 = sphi 0, %s38
      %s32 = sphi 0, %s30
      %s33 = sphi 0, %s31
      %s34 = sphi 0, %s32
      %s35 = sphi 0, %s33
      %s45 = sphi 0, %s47
      %s48 = sphi 0, %s45
      %s49 = sphi 0, %s48
      %s65 = sphi 0, %s49
      %s71 = sphi 0, %s73
      %s74 = sphi 0, %s71
      %s75 = sphi 0, %s74
      %s91 = sphi 0, %s75
      %s97 = sphi 0, %s99
      %s100 = sphi 0, %s97
      %s101 = sphi 0, %s100
      %s117 = sphi 0, %s101
      %s123 = sphi 0, %s125
      %s126 = sphi 0, %s123
      %s127 = sphi 0, %s126
      %s143 = sphi 0, %s127
      %s149 = sphi 0, %s151
      %s152 = sphi 0, %s149
      %s153 = sphi 0, %s152
      %s169 = sphi 0, %s153
      %s175 = sphi 0, %s177
      %s178 = sphi 0, %s175
      %s179 = sphi 0, %s178
      %s195 = sphi 0, %s179
      %s201 = sphi 0, %s203
      %s204 = sphi 0, %s201
      %s205 = sphi 0, %s204
      %s221 = sphi 0, %s205
      %s229 = sphi 0, %s231
      %s232 = sphi 0, %s229
      %s233 = sphi 0, %s232
      %s249 = sphi 0, %s233
      %s257 = sphi 0, %s259
      %s260 = sphi 0, %s257
      %s261 = sphi 0, %s260
      %s277 = sphi 0, %s261
    $region4: #{tpu_custom_call.1} parent=1 // loop_header_branch
      %26 = sbr.rel (%p24) target = $region8
    $region5: #{tpu_custom_call.1} parent=1 // loop_body
      %s28 = ssub.s32 %s23, 1
      %s29 = ssub.s32 %s23, 2
      %s36 = sadd.s32 1, %s31
      %p37 = scmp.ge.s32.totalorder %s36, 3
      %s38 = scalar_select %p37, 0, %s36
      %s39 = sadd.s32 1, %s30
      %s40 = scalar_select %p37, %s39, %s30
      %p41 = scmp.ge.s32.totalorder %s40, 1
      %s42 = scalar_select %p41, 0, %s40
      %s43 = ssub.s32 %s30, %s42
      %p44 = scmp.eq.s32.totalorder %s43, 0
      %s46 = sadd.s32 %s45, 1
      %s47 = scalar_select %p44, %s45, %s46
      %p50 = pneg %p44
      %p51 = scmp.eq.s32.totalorder %s23, 2
      %p52 = por %p50, %p51
      %p53 = scmp.ne.s32.totalorder %s45, %s48
      %p54 = scmp.eq.s32.totalorder %s23, 0
      %p55 = por %p53, %p54
      %p56 = scmp.ne.s32.totalorder %s45, %s48
      %p57 = scmp.eq.s32.totalorder %s28, 2
      %p58 = por %p56, %p57
      %p59 = scmp.ne.s32.totalorder %s48, %s49
      %p60 = scmp.eq.s32.totalorder %s28, 0
      %p61 = por %p59, %p60
      %p62 = scmp.ne.s32.totalorder %s48, %s49
      %p63 = scmp.eq.s32.totalorder %s29, 2
      %p64 = por %p62, %p63
      %p66 = scmp.ne.s32.totalorder %s49, %s65
      %p67 = scmp.eq.s32.totalorder %s29, 0
      %p68 = por %p66, %p67
      %s69 = ssub.s32 %s30, %s42
      %p70 = scmp.eq.s32.totalorder %s69, 0
      %s72 = sadd.s32 %s71, 1
      %s73 = scalar_select %p70, %s71, %s72
      %p76 = pneg %p70
      %p77 = scmp.eq.s32.totalorder %s23, 2
      %p78 = por %p76, %p77
      %p79 = scmp.ne.s32.totalorder %s71, %s74
      %p80 = scmp.eq.s32.totalorder %s23, 0
      %p81 = por %p79, %p80
      %p82 = scmp.ne.s32.totalorder %s71, %s74
      %p83 = scmp.eq.s32.totalorder %s28, 2
      %p84 = por %p82, %p83
      %p85 = scmp.ne.s32.totalorder %s74, %s75
      %p86 = scmp.eq.s32.totalorder %s28, 0
      %p87 = por %p85, %p86
      %p88 = scmp.ne.s32.totalorder %s74, %s75
      %p89 = scmp.eq.s32.totalorder %s29, 2
      %p90 = por %p88, %p89
      %p92 = scmp.ne.s32.totalorder %s75, %s91
      %p93 = scmp.eq.s32.totalorder %s29, 0
      %p94 = por %p92, %p93
      %s95 = ssub.s32 %s31, %s38
      %p96 = scmp.eq.s32.totalorder %s95, 0
      %s98 = sadd.s32 %s97, 1
      %s99 = scalar_select %p96, %s97, %s98
      %p102 = pneg %p96
      %p103 = scmp.eq.s32.totalorder %s23, 2
      %p104 = por %p102, %p103
      %p105 = scmp.ne.s32.totalorder %s97, %s100
      %p106 = scmp.eq.s32.totalorder %s23, 0
      %p107 = por %p105, %p106
      %p108 = scmp.ne.s32.totalorder %s97, %s100
      %p109 = scmp.eq.s32.totalorder %s28, 2
      %p110 = por %p108, %p109
      %p111 = scmp.ne.s32.totalorder %s100, %s101
      %p112 = scmp.eq.s32.totalorder %s28, 0
      %p113 = por %p111, %p112
      %p114 = scmp.ne.s32.totalorder %s100, %s101
      %p115 = scmp.eq.s32.totalorder %s29, 2
      %p116 = por %p114, %p115
      %p118 = scmp.ne.s32.totalorder %s101, %s117
      %p119 = scmp.eq.s32.totalorder %s29, 0
      %p120 = por %p118, %p119
      %s121 = ssub.s32 %s31, %s38
      %p122 = scmp.eq.s32.totalorder %s121, 0
      %s124 = sadd.s32 %s123, 1
      %s125 = scalar_select %p122, %s123, %s124
      %p128 = pneg %p122
      %p129 = scmp.eq.s32.totalorder %s23, 2
      %p130 = por %p128, %p129
      %p131 = scmp.ne.s32.totalorder %s123, %s126
      %p132 = scmp.eq.s32.totalorder %s23, 0
      %p133 = por %p131, %p132
      %p134 = scmp.ne.s32.totalorder %s123, %s126
      %p135 = scmp.eq.s32.totalorder %s28, 2
      %p136 = por %p134, %p135
      %p137 = scmp.ne.s32.totalorder %s126, %s127
      %p138 = scmp.eq.s32.totalorder %s28, 0
      %p139 = por %p137, %p138
      %p140 = scmp.ne.s32.totalorder %s126, %s127
      %p141 = scmp.eq.s32.totalorder %s29, 2
      %p142 = por %p140, %p141
      %p144 = scmp.ne.s32.totalorder %s127, %s143
      %p145 = scmp.eq.s32.totalorder %s29, 0
      %p146 = por %p144, %p145
      %s147 = ssub.s32 %s31, %s38
      %p148 = scmp.eq.s32.totalorder %s147, 0
      %s150 = sadd.s32 %s149, 1
      %s151 = scalar_select %p148, %s149, %s150
      %p154 = pneg %p148
      %p155 = scmp.eq.s32.totalorder %s23, 2
      %p156 = por %p154, %p155
      %p157 = scmp.ne.s32.totalorder %s149, %s152
      %p158 = scmp.eq.s32.totalorder %s23, 0
      %p159 = por %p157, %p158
      %p160 = scmp.ne.s32.totalorder %s149, %s152
      %p161 = scmp.eq.s32.totalorder %s28, 2
      %p162 = por %p160, %p161
      %p163 = scmp.ne.s32.totalorder %s152, %s153
      %p164 = scmp.eq.s32.totalorder %s28, 0
      %p165 = por %p163, %p164
      %p166 = scmp.ne.s32.totalorder %s152, %s153
      %p167 = scmp.eq.s32.totalorder %s29, 2
      %p168 = por %p166, %p167
      %p170 = scmp.ne.s32.totalorder %s153, %s169
      %p171 = scmp.eq.s32.totalorder %s29, 0
      %p172 = por %p170, %p171
      %s173 = ssub.s32 %s31, %s38
      %p174 = scmp.eq.s32.totalorder %s173, 0
      %s176 = sadd.s32 %s175, 1
      %s177 = scalar_select %p174, %s175, %s176
      %p180 = pneg %p174
      %p181 = scmp.eq.s32.totalorder %s23, 2
      %p182 = por %p180, %p181
      %p183 = scmp.ne.s32.totalorder %s175, %s178
      %p184 = scmp.eq.s32.totalorder %s23, 0
      %p185 = por %p183, %p184
      %p186 = scmp.ne.s32.totalorder %s175, %s178
      %p187 = scmp.eq.s32.totalorder %s28, 2
      %p188 = por %p186, %p187
      %p189 = scmp.ne.s32.totalorder %s178, %s179
      %p190 = scmp.eq.s32.totalorder %s28, 0
      %p191 = por %p189, %p190
      %p192 = scmp.ne.s32.totalorder %s178, %s179
      %p193 = scmp.eq.s32.totalorder %s29, 2
      %p194 = por %p192, %p193
      %p196 = scmp.ne.s32.totalorder %s179, %s195
      %p197 = scmp.eq.s32.totalorder %s29, 0
      %p198 = por %p196, %p197
      %s199 = ssub.s32 %s31, %s38
      %p200 = scmp.eq.s32.totalorder %s199, 0
      %s202 = sadd.s32 %s201, 1
      %s203 = scalar_select %p200, %s201, %s202
      %p206 = pneg %p200
      %p207 = scmp.eq.s32.totalorder %s23, 2
      %p208 = por %p206, %p207
      %p209 = scmp.ne.s32.totalorder %s201, %s204
      %p210 = scmp.eq.s32.totalorder %s23, 0
      %p211 = por %p209, %p210
      %p212 = scmp.ne.s32.totalorder %s201, %s204
      %p213 = scmp.eq.s32.totalorder %s28, 2
      %p214 = por %p212, %p213
      %p215 = scmp.ne.s32.totalorder %s204, %s205
      %p216 = scmp.eq.s32.totalorder %s28, 0
      %p217 = por %p215, %p216
      %p218 = scmp.ne.s32.totalorder %s204, %s205
      %p219 = scmp.eq.s32.totalorder %s29, 2
      %p220 = por %p218, %p219
      %p222 = scmp.ne.s32.totalorder %s205, %s221
      %p223 = scmp.eq.s32.totalorder %s29, 0
      %p224 = por %p222, %p223
      %s225 = ssub.s32 %s30, %s42
      %s226 = ssub.s32 %s31, %s38
      %s227 = sor.u32 %s225, %s226
      %p228 = scmp.eq.s32.totalorder %s227, 0
      %s230 = sadd.s32 %s229, 1
      %s231 = scalar_select %p228, %s229, %s230
      %p234 = pneg %p228
      %p235 = scmp.eq.s32.totalorder %s23, 2
      %p236 = por %p234, %p235
      %p237 = scmp.ne.s32.totalorder %s229, %s232
      %p238 = scmp.eq.s32.totalorder %s23, 0
      %p239 = por %p237, %p238
      %p240 = scmp.ne.s32.totalorder %s229, %s232
      %p241 = scmp.eq.s32.totalorder %s28, 2
      %p242 = por %p240, %p241
      %p243 = scmp.ne.s32.totalorder %s232, %s233
      %p244 = scmp.eq.s32.totalorder %s28, 0
      %p245 = por %p243, %p244
      %p246 = scmp.ne.s32.totalorder %s232, %s233
      %p247 = scmp.eq.s32.totalorder %s29, 2
      %p248 = por %p246, %p247
      %p250 = scmp.ne.s32.totalorder %s233, %s249
      %p251 = scmp.eq.s32.totalorder %s29, 0
      %p252 = por %p250, %p251
      %s253 = ssub.s32 %s30, %s42
      %s254 = ssub.s32 %s31, %s38
      %s255 = sor.u32 %s253, %s254
      %p256 = scmp.eq.s32.totalorder %s255, 0
      %s258 = sadd.s32 %s257, 1
      %s259 = scalar_select %p256, %s257, %s258
      %p262 = pneg %p256
      %p263 = scmp.eq.s32.totalorder %s23, 2
      %p264 = por %p262, %p263
      %p265 = scmp.ne.s32.totalorder %s257, %s260
      %p266 = scmp.eq.s32.totalorder %s23, 0
      %p267 = por %p265, %p266
      %p268 = scmp.ne.s32.totalorder %s257, %s260
      %p269 = scmp.eq.s32.totalorder %s28, 2
      %p270 = por %p268, %p269
      %p271 = scmp.ne.s32.totalorder %s260, %s261
      %p272 = scmp.eq.s32.totalorder %s28, 0
      %p273 = por %p271, %p272
      %p274 = scmp.ne.s32.totalorder %s260, %s261
      %p275 = scmp.eq.s32.totalorder %s29, 2
      %p276 = por %p274, %p275
      %p278 = scmp.ne.s32.totalorder %s261, %s277
      %p279 = scmp.eq.s32.totalorder %s29, 0
      %p280 = por %p278, %p279
      %p281 = scmp.le.s32.totalorder 1, %s23
      %p282 = scmp.lt.s32.totalorder %s23, 4
      %p283 = pnand %p281, %p282
      %p284 = pneg %p283
      // Predicated region
      $region9: #{tpu_custom_call.1} parent=5 // pred_check
        _
      $region10: #{tpu_custom_call.1} parent=5 // pred_check_branch
        %286 = sbr.rel (%p283) target = $region12
      $region11: #{tpu_custom_call.1} parent=5 // pred_region
        %s287 = ssub.s32 %s23, 1
        // Predicated region
        $region13: #{tpu_custom_call.1} parent=11 // pred_check
          %p288 = pneg %p61
        $region14: #{tpu_custom_call.1} parent=11 // pred_check_branch
          %290 = sbr.rel (%p288) target = $region16
        $region15: #{tpu_custom_call.1} parent=11 // pred_region
          %s291 = smul.u32 14, %s32
          %s293 = ssub.s32 896, 896
          %294 = vsyncadd [#allocation3], %s293
          %s295 = smul.addr %s291, 64
          %s296 = scalar_lea.hbm %s0, %s295
          %s297 = sshll.u32 [#allocation2], 4
          %s298 = int_to_ptr.vmem [resolvable:$true] %s297
          %303 = dma.hbm_to_vmem [thread:$0]  %s296, 896, %s298, [#allocation3], 64, 64, 4
        $region16: #{tpu_custom_call.1} parent=11 // pred_fallthru
          _
        // Predicated region
        $region17: #{tpu_custom_call.1} parent=11 // pred_check
          %p304 = pneg %p87
        $region18: #{tpu_custom_call.1} parent=11 // pred_check_branch
          %306 = sbr.rel (%p304) target = $region20
        $region19: #{tpu_custom_call.1} parent=11 // pred_region
          %s307 = smul.u32 14, %s32
          %s309 = ssub.s32 896, 896
          %310 = vsyncadd [#allocation6], %s309
          %s311 = smul.addr %s307, 64
          %s312 = scalar_lea.hbm %s1, %s311
          %s313 = sshll.u32 [#allocation5], 4
          %s314 = int_to_ptr.vmem [resolvable:$true] %s313
          %319 = dma.hbm_to_vmem [thread:$0]  %s312, 896, %s314, [#allocation6], 64, 64, 4
        $region20: #{tpu_custom_call.1} parent=11 // pred_fallthru
          _
      $region12: #{tpu_custom_call.1} parent=5 // pred_fallthru
        _
      %p320 = scmp.lt.s32.totalorder %s23, 3
      // Predicated region
      $region21: #{tpu_custom_call.1} parent=5 // pred_check
        %p321 = pneg %p320
      $region22: #{tpu_custom_call.1} parent=5 // pred_check_branch
        %323 = sbr.rel (%p321) target = $region24
      $region23: #{tpu_custom_call.1} parent=5 // pred_region
        // Predicated region
        $region25: #{tpu_custom_call.1} parent=23 // pred_check
          %p324 = pneg %p107
        $region26: #{tpu_custom_call.1} parent=23 // pred_check_branch
          %326 = sbr.rel (%p324) target = $region28
        $region27: #{tpu_custom_call.1} parent=23 // pred_region
          %s327 = sand.u32 %s23, 1
          %s328 = scalar_lea.sflag [#allocation3], %s327
          %s329 = sand.u32 %s97, 1
          %s330 = smul.addr %s329, 64
          %s331 = scalar_lea.vmem [#allocation7], %s330
          %s333 = ssub.s32 1024, 1024
          %334 = vsyncadd %s328, %s333
          %s335 = smul.addr %s31, 64
          %s336 = scalar_lea.hbm %s2, %s335
          %s337 = sshll.u32 %s331, 4
          %s338 = int_to_ptr.vmem [resolvable:$true] %s337
          %343 = dma.hbm_to_vmem [thread:$0]  %s336, 1024, %s338, %s328, 192, 64, 4
        $region28: #{tpu_custom_call.1} parent=23 // pred_fallthru
          _
        // Predicated region
        $region29: #{tpu_custom_call.1} parent=23 // pred_check
          %p344 = pneg %p133
        $region30: #{tpu_custom_call.1} parent=23 // pred_check_branch
          %346 = sbr.rel (%p344) target = $region32
        $region31: #{tpu_custom_call.1} parent=23 // pred_region
          %s347 = sand.u32 %s23, 1
          %s348 = scalar_lea.sflag [#allocation3], %s347
          %s349 = sand.u32 %s123, 1
          %s350 = smul.addr %s349, 64
          %s351 = scalar_lea.vmem [#allocation8], %s350
          %s353 = ssub.s32 1024, 1024
          %354 = vsyncadd %s348, %s353
          %s355 = smul.addr %s31, 64
          %s356 = scalar_lea.hbm %s3, %s355
          %s357 = sshll.u32 %s351, 4
          %s358 = int_to_ptr.vmem [resolvable:$true] %s357
          %363 = dma.hbm_to_vmem [thread:$0]  %s356, 1024, %s358, %s348, 192, 64, 4
        $region32: #{tpu_custom_call.1} parent=23 // pred_fallthru
          _
        // Predicated region
        $region33: #{tpu_custom_call.1} parent=23 // pred_check
          %p364 = pneg %p159
        $region34: #{tpu_custom_call.1} parent=23 // pred_check_branch
          %366 = sbr.rel (%p364) target = $region36
        $region35: #{tpu_custom_call.1} parent=23 // pred_region
          %s367 = sand.u32 %s23, 1
          %s368 = scalar_lea.sflag [#allocation3], %s367
          %s369 = sand.u32 %s149, 1
          %s370 = smul.addr %s369, 64
          %s371 = scalar_lea.vmem [#allocation9], %s370
          %s373 = ssub.s32 1024, 1024
          %374 = vsyncadd %s368, %s373
          %s375 = smul.addr %s31, 64
          %s376 = scalar_lea.hbm %s4, %s375
          %s377 = sshll.u32 %s371, 4
          %s378 = int_to_ptr.vmem [resolvable:$true] %s377
          %383 = dma.hbm_to_vmem [thread:$0]  %s376, 1024, %s378, %s368, 192, 64, 4
        $region36: #{tpu_custom_call.1} parent=23 // pred_fallthru
          _
        // Predicated region
        $region37: #{tpu_custom_call.1} parent=23 // pred_check
          %p384 = pneg %p185
        $region38: #{tpu_custom_call.1} parent=23 // pred_check_branch
          %386 = sbr.rel (%p384) target = $region40
        $region39: #{tpu_custom_call.1} parent=23 // pred_region
          %s387 = sand.u32 %s23, 1
          %s388 = scalar_lea.sflag [#allocation3], %s387
          %s389 = sand.u32 %s175, 1
          %s390 = scalar_lea.vmem [#allocation10], %s389
          %s392 = ssub.s32 16, 16
          %393 = vsyncadd %s388, %s392
          %s394 = smul.addr %s31, 16
          %s395 = scalar_lea.hbm %s5, %s394
          %s397 = sshll.u32 %s390, 4
          %s398 = int_to_ptr.vmem [resolvable:$true] %s397
          %400 = dma.hbm_to_vmem [thread:$0]  %s395, 16, %s398, %s388
        $region40: #{tpu_custom_call.1} parent=23 // pred_fallthru
          _
        // Predicated region
        $region41: #{tpu_custom_call.1} parent=23 // pred_check
          %p401 = pneg %p211
        $region42: #{tpu_custom_call.1} parent=23 // pred_check_branch
          %403 = sbr.rel (%p401) target = $region44
        $region43: #{tpu_custom_call.1} parent=23 // pred_region
          %s404 = sand.u32 %s23, 1
          %s405 = scalar_lea.sflag [#allocation3], %s404
          %s406 = sand.u32 %s201, 1
          %s407 = scalar_lea.vmem [#allocation11], %s406
          %s409 = ssub.s32 16, 16
          %410 = vsyncadd %s405, %s409
          %s411 = smul.addr %s31, 16
          %s412 = scalar_lea.hbm %s6, %s411
          %s414 = sshll.u32 %s407, 4
          %s415 = int_to_ptr.vmem [resolvable:$true] %s414
          %417 = dma.hbm_to_vmem [thread:$0]  %s412, 16, %s415, %s405
        $region44: #{tpu_custom_call.1} parent=23 // pred_fallthru
          _
      $region24: #{tpu_custom_call.1} parent=5 // pred_fallthru
        _
      %p418 = scmp.le.s32.totalorder 1, %s23
      %p419 = scmp.lt.s32.totalorder %s23, 4
      %p420 = pnand %p418, %p419
      %p421 = pneg %p420
      // Predicated region
      $region45: #{tpu_custom_call.1} parent=5 // pred_check
        _
      $region46: #{tpu_custom_call.1} parent=5 // pred_check_branch
        %423 = sbr.rel (%p420) target = $region48
      $region47: #{tpu_custom_call.1} parent=5 // pred_region
        %s424 = ssub.s32 %s23, 1
        // Predicated region
        $region49: #{tpu_custom_call.1} parent=47 // pred_check
          %p425 = pneg %p61
        $region50: #{tpu_custom_call.1} parent=47 // pred_check_branch
          %427 = sbr.rel (%p425) target = $region52
        $region51: #{tpu_custom_call.1} parent=47 // pred_region
          %428 = dma.done [#allocation3], 896
        $region52: #{tpu_custom_call.1} parent=47 // pred_fallthru
          _
        // Predicated region
        $region53: #{tpu_custom_call.1} parent=47 // pred_check
          %p429 = pneg %p87
        $region54: #{tpu_custom_call.1} parent=47 // pred_check_branch
          %431 = sbr.rel (%p429) target = $region56
        $region55: #{tpu_custom_call.1} parent=47 // pred_region
          %432 = dma.done [#allocation6], 896
        $region56: #{tpu_custom_call.1} parent=47 // pred_fallthru
          _
        %s433 = sand.u32 %s28, 1
        %s434 = scalar_lea.sflag [#allocation3], %s433
        %s435 = sand.u32 %s100, 1
        %s436 = smul.addr %s435, 64
        %s437 = scalar_lea.vmem [#allocation7], %s436
        // Predicated region
        $region57: #{tpu_custom_call.1} parent=47 // pred_check
          %p438 = pneg %p113
        $region58: #{tpu_custom_call.1} parent=47 // pred_check_branch
          %440 = sbr.rel (%p438) target = $region60
        $region59: #{tpu_custom_call.1} parent=47 // pred_region
          %441 = dma.done %s434, 1024
        $region60: #{tpu_custom_call.1} parent=47 // pred_fallthru
          _
        %s442 = sand.u32 %s28, 1
        %s443 = scalar_lea.sflag [#allocation3], %s442
        %s444 = sand.u32 %s126, 1
        %s445 = smul.addr %s444, 64
        %s446 = scalar_lea.vmem [#allocation8], %s445
        // Predicated region
        $region61: #{tpu_custom_call.1} parent=47 // pred_check
          %p447 = pneg %p139
        $region62: #{tpu_custom_call.1} parent=47 // pred_check_branch
          %449 = sbr.rel (%p447) target = $region64
        $region63: #{tpu_custom_call.1} parent=47 // pred_region
          %450 = dma.done %s443, 1024
        $region64: #{tpu_custom_call.1} parent=47 // pred_fallthru
          _
        %s451 = sand.u32 %s28, 1
        %s452 = scalar_lea.sflag [#allocation3], %s451
        %s453 = sand.u32 %s152, 1
        %s454 = smul.addr %s453, 64
        %s455 = scalar_lea.vmem [#allocation9], %s454
        // Predicated region
        $region65: #{tpu_custom_call.1} parent=47 // pred_check
          %p456 = pneg %p165
        $region66: #{tpu_custom_call.1} parent=47 // pred_check_branch
          %458 = sbr.rel (%p456) target = $region68
        $region67: #{tpu_custom_call.1} parent=47 // pred_region
          %459 = dma.done %s452, 1024
        $region68: #{tpu_custom_call.1} parent=47 // pred_fallthru
          _
        %s460 = sand.u32 %s28, 1
        %s461 = scalar_lea.sflag [#allocation3], %s460
        %s462 = sand.u32 %s178, 1
        %s463 = scalar_lea.vmem [#allocation10], %s462
        // Predicated region
        $region69: #{tpu_custom_call.1} parent=47 // pred_check
          %p464 = pneg %p191
        $region70: #{tpu_custom_call.1} parent=47 // pred_check_branch
          %466 = sbr.rel (%p464) target = $region72
        $region71: #{tpu_custom_call.1} parent=47 // pred_region
          %467 = dma.done %s461, 16
        $region72: #{tpu_custom_call.1} parent=47 // pred_fallthru
          _
        %s468 = sand.u32 %s28, 1
        %s469 = scalar_lea.sflag [#allocation3], %s468
        %s470 = sand.u32 %s204, 1
        %s471 = scalar_lea.vmem [#allocation11], %s470
        // Predicated region
        $region73: #{tpu_custom_call.1} parent=47 // pred_check
          %p472 = pneg %p217
        $region74: #{tpu_custom_call.1} parent=47 // pred_check_branch
          %474 = sbr.rel (%p472) target = $region76
        $region75: #{tpu_custom_call.1} parent=47 // pred_region
          %475 = dma.done %s469, 16
        $region76: #{tpu_custom_call.1} parent=47 // pred_fallthru
          _
        %p476 = pneg %p61
        %p477 = pneg %p58
        %p478 = pneg %p87
        %p479 = pneg %p84
        %s480 = sand.u32 %s28, 1
        %s481 = scalar_lea.sflag [#allocation3], %s480
        %s482 = sand.u32 %s100, 1
        %s483 = smul.addr %s482, 64
        %s484 = scalar_lea.vmem [#allocation7], %s483
        %p485 = pneg %p113
        %p486 = pneg %p110
        %s487 = sand.u32 %s28, 1
        %s488 = scalar_lea.sflag [#allocation3], %s487
        %s489 = sand.u32 %s126, 1
        %s490 = smul.addr %s489, 64
        %s491 = scalar_lea.vmem [#allocation8], %s490
        %p492 = pneg %p139
        %p493 = pneg %p136
        %s494 = sand.u32 %s28, 1
        %s495 = scalar_lea.sflag [#allocation3], %s494
        %s496 = sand.u32 %s152, 1
        %s497 = smul.addr %s496, 64
        %s498 = scalar_lea.vmem [#allocation9], %s497
        %p499 = pneg %p165
        %p500 = pneg %p162
        %s501 = sand.u32 %s28, 1
        %s502 = scalar_lea.sflag [#allocation3], %s501
        %s503 = sand.u32 %s178, 1
        %s504 = scalar_lea.vmem [#allocation10], %s503
        %p505 = pneg %p191
        %p506 = pneg %p188
        %s507 = sand.u32 %s28, 1
        %s508 = scalar_lea.sflag [#allocation3], %s507
        %s509 = sand.u32 %s204, 1
        %s510 = scalar_lea.vmem [#allocation11], %s509
        %p511 = pneg %p217
        %p512 = pneg %p214
        %p513 = pneg %p245
        %p514 = pneg %p242
        %s515 = sand.u32 %s232, 1
        %s516 = scalar_lea.sflag [#allocation4], %s515
        %s517 = sand.u32 %s232, 1
        %s518 = smul.addr %s517, 112
        %s519 = scalar_lea.vmem [#allocation12], %s518
        %p520 = pneg %p273
        %p521 = pneg %p270
        %s522 = sand.u32 %s260, 1
        %s523 = scalar_lea.sflag [#allocation14], %s522
        %s524 = sand.u32 %s260, 1
        %s525 = smul.addr %s524, 112
        %s526 = scalar_lea.vmem [#allocation13], %s525
        %s527 = smul.u32 14, %s32
        %s528 = smul.u32 14, %s32
        %s529 = smul.u32 14, %s32
        %s530 = smul.u32 14, %s32
        %v532 = vld [vmem:[#allocation2] sm:$0xf]
        %v533 = vld [vmem:[#allocation2 + $0x4] sm:$0xf]
        %v534 = vld [vmem:[#allocation2 + $0x8] sm:$0xf]
        %v535 = vld [vmem:[#allocation2 + $0xc] sm:$0xf]
        %v536 = vld [vmem:[#allocation2 + $0x10] sm:$0xf]
        %v537 = vld [vmem:[#allocation2 + $0x14] sm:$0xf]
        %v538 = vld [vmem:[#allocation2 + $0x18] sm:$0xf]
        %v539 = vld [vmem:[#allocation2 + $0x1c] sm:$0xf]
        %v540 = vld [vmem:[#allocation2 + $0x20] sm:$0xf]
        %v541 = vld [vmem:[#allocation2 + $0x24] sm:$0xf]
        %v542 = vld [vmem:[#allocation2 + $0x28] sm:$0xf]
        %v543 = vld [vmem:[#allocation2 + $0x2c] sm:$0xf]
        %v544 = vld [vmem:[#allocation2 + $0x30] sm:$0xf]
        %v545 = vld [vmem:[#allocation2 + $0x34] sm:$0xf]
        %v546 = vld [vmem:[#allocation5] sm:$0xf]
        %v547 = vld [vmem:[#allocation5 + $0x4] sm:$0xf]
        %v548 = vld [vmem:[#allocation5 + $0x8] sm:$0xf]
        %v549 = vld [vmem:[#allocation5 + $0xc] sm:$0xf]
        %v550 = vld [vmem:[#allocation5 + $0x10] sm:$0xf]
        %v551 = vld [vmem:[#allocation5 + $0x14] sm:$0xf]
        %v552 = vld [vmem:[#allocation5 + $0x18] sm:$0xf]
        %v553 = vld [vmem:[#allocation5 + $0x1c] sm:$0xf]
        %v554 = vld [vmem:[#allocation5 + $0x20] sm:$0xf]
        %v555 = vld [vmem:[#allocation5 + $0x24] sm:$0xf]
        %v556 = vld [vmem:[#allocation5 + $0x28] sm:$0xf]
        %v557 = vld [vmem:[#allocation5 + $0x2c] sm:$0xf]
        %v558 = vld [vmem:[#allocation5 + $0x30] sm:$0xf]
        %v559 = vld [vmem:[#allocation5 + $0x34] sm:$0xf]
        %v560 = vld [vmem:[%s437] sm:$0xf]
        %v561 = vld [vmem:[%s437 + $0x4] sm:$0xf]
        %v562 = vld [vmem:[%s437 + $0x8] sm:$0xf]
        %v563 = vld [vmem:[%s437 + $0xc] sm:$0xf]
        %v564 = vld [vmem:[%s437 + $0x10] sm:$0xf]
        %v565 = vld [vmem:[%s437 + $0x14] sm:$0xf]
        %v566 = vld [vmem:[%s437 + $0x18] sm:$0xf]
        %v567 = vld [vmem:[%s437 + $0x1c] sm:$0xf]
        %v568 = vld [vmem:[%s437 + $0x20] sm:$0xf]
        %v569 = vld [vmem:[%s437 + $0x24] sm:$0xf]
        %v570 = vld [vmem:[%s437 + $0x28] sm:$0xf]
        %v571 = vld [vmem:[%s437 + $0x2c] sm:$0xf]
        %v572 = vld [vmem:[%s437 + $0x30] sm:$0xf]
        %v573 = vld [vmem:[%s437 + $0x34] sm:$0xf]
        %v574 = vld [vmem:[%s437 + $0x38] sm:$0xf]
        %v575 = vld [vmem:[%s437 + $0x3c] sm:$0xf]
        %v590 = vunpack.c.l.b16 %v532
        %v591 = vunpack.c.l.b16 %v533
        %v592 = vunpack.c.l.b16 %v534
        %v593 = vunpack.c.l.b16 %v535
        %v594 = vunpack.c.l.b16 %v536
        %v595 = vunpack.c.l.b16 %v537
        %v596 = vunpack.c.l.b16 %v538
        %v597 = vunpack.c.l.b16 %v539
        %v598 = vunpack.c.l.b16 %v540
        %v599 = vunpack.c.l.b16 %v541
        %v600 = vunpack.c.l.b16 %v542
        %v601 = vunpack.c.l.b16 %v543
        %v602 = vunpack.c.l.b16 %v544
        %v603 = vunpack.c.l.b16 %v545
        %v604 = vpack.c.b16 %v591, %v590
        %v605 = vpack.c.b16 %v593, %v592
        %v606 = vpack.c.b16 %v595, %v594
        %v607 = vpack.c.b16 %v597, %v596
        %v608 = vpack.c.b16 %v599, %v598
        %v609 = vpack.c.b16 %v601, %v600
        %v610 = vpack.c.b16 %v603, %v602
        %v634 = vunpack.c.l.b16 %v560
        %v635 = vunpack.c.l.b16 %v561
        %v636 = vunpack.c.l.b16 %v562
        %v637 = vunpack.c.l.b16 %v563
        %v638 = vunpack.c.l.b16 %v564
        %v639 = vunpack.c.l.b16 %v565
        %v640 = vunpack.c.l.b16 %v566
        %v641 = vunpack.c.l.b16 %v567
        %v642 = vunpack.c.l.b16 %v568
        %v643 = vunpack.c.l.b16 %v569
        %v644 = vunpack.c.l.b16 %v570
        %v645 = vunpack.c.l.b16 %v571
        %v646 = vunpack.c.l.b16 %v572
        %v647 = vunpack.c.l.b16 %v573
        %v648 = vunpack.c.l.b16 %v574
        %v649 = vunpack.c.l.b16 %v575
        %v650 = vpack.c.b16 %v635, %v634
        %v651 = vpack.c.b16 %v637, %v636
        %v652 = vpack.c.b16 %v639, %v638
        %v653 = vpack.c.b16 %v641, %v640
        %v654 = vpack.c.b16 %v643, %v642
        %v655 = vpack.c.b16 %v645, %v644
        %v656 = vpack.c.b16 %v647, %v646
        %v657 = vpack.c.b16 %v649, %v648
        %666 = vmatprep.subr.bf16.mxu0 0
        %667 = vmatpush1.bf16.msra.mxu0 %v650
        %668 = vmatprep.subr.bf16.mxu0 0
        %669 = vmatpush1.bf16.msra.mxu0 %v651
        %670 = vmatprep.subr.bf16.mxu0 0
        %671 = vmatpush1.bf16.msra.mxu0 %v652
        %672 = vmatprep.subr.bf16.mxu0 0
        %673 = vmatpush1.bf16.msra.mxu0 %v653
        %674 = vmatprep.subr.bf16.mxu0 0
        %675 = vmatpush1.bf16.msra.mxu0 %v654
        %676 = vmatprep.subr.bf16.mxu0 0
        %677 = vmatpush1.bf16.msra.mxu0 %v655
        %678 = vmatprep.subr.bf16.mxu0 0
        %679 = vmatpush1.bf16.msra.mxu0 %v656
        %680 = vmatprep.subr.bf16.mxu0 0
        %681 = vmatpush1.bf16.msra.mxu0 %v657
        %682 = vmatprep.subr.bf16.mxu0 0
        %683 = vmatpush1.bf16.msra.mxu0 0
        %684 = vmatprep.subr.bf16.mxu0 0
        %685 = vmatpush1.bf16.msra.mxu0 0
        %686 = vmatprep.subr.bf16.mxu0 0
        %687 = vmatpush1.bf16.msra.mxu0 0
        %688 = vmatprep.subr.bf16.mxu0 0
        %689 = vmatpush1.bf16.msra.mxu0 0
        %690 = vmatprep.subr.bf16.mxu0 0
        %691 = vmatpush1.bf16.msra.mxu0 0
        %692 = vmatprep.subr.bf16.mxu0 0
        %693 = vmatpush1.bf16.msra.mxu0 0
        %694 = vmatprep.subr.bf16.mxu0 0
        %695 = vmatpush1.bf16.msra.mxu0 0
        %696 = vmatprep.subr.bf16.mxu0 0
        %697 = vmatpush1.bf16.msra.mxu0 0
        %698 = vmatprep.mubr.bf16.mxu0 0
        %699 = vmatmul.mubr.bf16.gmra.mrb[0].mxu0 %v604
        %v700 = vpop.f32.mrb[0].mxu0
        %v701 = vadd.f32 0.0, %v700
        %v702 = vpop.f32.mrb[0].mxu0
        %v703 = vpop.f32.mrb[0].mxu0
        %v704 = vadd.f32 0.0, %v703
        %v705 = vpop.f32.mrb[0].mxu0
        %706 = vmatprep.mubr.bf16.mxu0 0
        %707 = vmatmul.mubr.bf16.gmra.mrb[0].mxu0 %v605
        %v708 = vpop.f32.mrb[0].mxu0
        %v709 = vadd.f32 0.0, %v708
        %v710 = vpop.f32.mrb[0].mxu0
        %v711 = vpop.f32.mrb[0].mxu0
        %v712 = vadd.f32 0.0, %v711
        %v713 = vpop.f32.mrb[0].mxu0
        %714 = vmatprep.mubr.bf16.mxu0 0
        %715 = vmatmul.mubr.bf16.gmra.mrb[0].mxu0 %v606
        %v716 = vpop.f32.mrb[0].mxu0
        %v717 = vadd.f32 0.0, %v716
        %v718 = vpop.f32.mrb[0].mxu0
        %v719 = vpop.f32.mrb[0].mxu0
        %v720 = vadd.f32 0.0, %v719
        %v721 = vpop.f32.mrb[0].mxu0
        %722 = vmatprep.mubr.bf16.mxu0 0
        %723 = vmatmul.mubr.bf16.gmra.mrb[0].mxu0 %v607
        %v724 = vpop.f32.mrb[0].mxu0
        %v725 = vadd.f32 0.0, %v724
        %v726 = vpop.f32.mrb[0].mxu0
        %v727 = vpop.f32.mrb[0].mxu0
        %v728 = vadd.f32 0.0, %v727
        %v729 = vpop.f32.mrb[0].mxu0
        %730 = vmatprep.mubr.bf16.mxu0 0
        %731 = vmatmul.mubr.bf16.gmra.mrb[0].mxu0 %v608
        %v732 = vpop.f32.mrb[0].mxu0
        %v733 = vadd.f32 0.0, %v732
        %v734 = vpop.f32.mrb[0].mxu0
        %v735 = vpop.f32.mrb[0].mxu0
        %v736 = vadd.f32 0.0, %v735
        %v737 = vpop.f32.mrb[0].mxu0
        %738 = vmatprep.mubr.bf16.mxu0 0
        %739 = vmatmul.mubr.bf16.gmra.mrb[0].mxu0 %v609
        %v740 = vpop.f32.mrb[0].mxu0
        %v741 = vadd.f32 0.0, %v740
        %v742 = vpop.f32.mrb[0].mxu0
        %v743 = vpop.f32.mrb[0].mxu0
        %v744 = vadd.f32 0.0, %v743
        %v745 = vpop.f32.mrb[0].mxu0
        %746 = vmatprep.mubr.bf16.mxu0 0
        %747 = vmatmul.mubr.bf16.gmra.mrb[0].mxu0 %v610
        %v748 = vpop.f32.mrb[0].mxu0
        %v749 = vadd.f32 0.0, %v748
        %v750 = vpop.f32.mrb[0].mxu0
        %v751 = vpop.f32.mrb[0].mxu0
        %v752 = vadd.f32 0.0, %v751
        %v753 = vpop.f32.mrb[0].mxu0
        %754 = vdwg.mxu0
        %v755 = vld [vmem:[%s446] sm:$0xf]
        %v756 = vld [vmem:[%s446 + $0x4] sm:$0xf]
        %v757 = vld [vmem:[%s446 + $0x8] sm:$0xf]
        %v758 = vld [vmem:[%s446 + $0xc] sm:$0xf]
        %v759 = vld [vmem:[%s446 + $0x10] sm:$0xf]
        %v760 = vld [vmem:[%s446 + $0x14] sm:$0xf]
        %v761 = vld [vmem:[%s446 + $0x18] sm:$0xf]
        %v762 = vld [vmem:[%s446 + $0x1c] sm:$0xf]
        %v763 = vld [vmem:[%s446 + $0x20] sm:$0xf]
        %v764 = vld [vmem:[%s446 + $0x24] sm:$0xf]
        %v765 = vld [vmem:[%s446 + $0x28] sm:$0xf]
        %v766 = vld [vmem:[%s446 + $0x2c] sm:$0xf]
        %v767 = vld [vmem:[%s446 + $0x30] sm:$0xf]
        %v768 = vld [vmem:[%s446 + $0x34] sm:$0xf]
        %v769 = vld [vmem:[%s446 + $0x38] sm:$0xf]
        %v770 = vld [vmem:[%s446 + $0x3c] sm:$0xf]
        %v785 = vunpack.c.l.b16 %v546
        %v786 = vunpack.c.l.b16 %v547
        %v787 = vunpack.c.l.b16 %v548
        %v788 = vunpack.c.l.b16 %v549
        %v789 = vunpack.c.l.b16 %v550
        %v790 = vunpack.c.l.b16 %v551
        %v791 = vunpack.c.l.b16 %v552
        %v792 = vunpack.c.l.b16 %v553
        %v793 = vunpack.c.l.b16 %v554
        %v794 = vunpack.c.l.b16 %v555
        %v795 = vunpack.c.l.b16 %v556
        %v796 = vunpack.c.l.b16 %v557
        %v797 = vunpack.c.l.b16 %v558
        %v798 = vunpack.c.l.b16 %v559
        %v799 = vpack.c.b16 %v786, %v785
        %v800 = vpack.c.b16 %v788, %v787
        %v801 = vpack.c.b16 %v790, %v789
        %v802 = vpack.c.b16 %v792, %v791
        %v803 = vpack.c.b16 %v794, %v793
        %v804 = vpack.c.b16 %v796, %v795
        %v805 = vpack.c.b16 %v798, %v797
        %v829 = vunpack.c.l.b16 %v755
        %v830 = vunpack.c.l.b16 %v756
        %v831 = vunpack.c.l.b16 %v757
        %v832 = vunpack.c.l.b16 %v758
        %v833 = vunpack.c.l.b16 %v759
        %v834 = vunpack.c.l.b16 %v760
        %v835 = vunpack.c.l.b16 %v761
        %v836 = vunpack.c.l.b16 %v762
        %v837 = vunpack.c.l.b16 %v763
        %v838 = vunpack.c.l.b16 %v764
        %v839 = vunpack.c.l.b16 %v765
        %v840 = vunpack.c.l.b16 %v766
        %v841 = vunpack.c.l.b16 %v767
        %v842 = vunpack.c.l.b16 %v768
        %v843 = vunpack.c.l.b16 %v769
        %v844 = vunpack.c.l.b16 %v770
        %v845 = vpack.c.b16 %v830, %v829
        %v846 = vpack.c.b16 %v832, %v831
        %v847 = vpack.c.b16 %v834, %v833
        %v848 = vpack.c.b16 %v836, %v835
        %v849 = vpack.c.b16 %v838, %v837
        %v850 = vpack.c.b16 %v840, %v839
        %v851 = vpack.c.b16 %v842, %v841
        %v852 = vpack.c.b16 %v844, %v843
        %861 = vmatprep.subr.bf16.mxu0 0
        %862 = vmatpush1.bf16.msra.mxu0 %v845
        %863 = vmatprep.subr.bf16.mxu0 0
        %864 = vmatpush1.bf16.msra.mxu0 %v846
        %865 = vmatprep.subr.bf16.mxu0 0
        %866 = vmatpush1.bf16.msra.mxu0 %v847
        %867 = vmatprep.subr.bf16.mxu0 0
        %868 = vmatpush1.bf16.msra.mxu0 %v848
        %869 = vmatprep.subr.bf16.mxu0 0
        %870 = vmatpush1.bf16.msra.mxu0 %v849
        %871 = vmatprep.subr.bf16.mxu0 0
        %872 = vmatpush1.bf16.msra.mxu0 %v850
        %873 = vmatprep.subr.bf16.mxu0 0
        %874 = vmatpush1.bf16.msra.mxu0 %v851
        %875 = vmatprep.subr.bf16.mxu0 0
        %876 = vmatpush1.bf16.msra.mxu0 %v852
        %877 = vmatprep.subr.bf16.mxu0 0
        %878 = vmatpush1.bf16.msra.mxu0 0
        %879 = vmatprep.subr.bf16.mxu0 0
        %880 = vmatpush1.bf16.msra.mxu0 0
        %881 = vmatprep.subr.bf16.mxu0 0
        %882 = vmatpush1.bf16.msra.mxu0 0
        %883 = vmatprep.subr.bf16.mxu0 0
        %884 = vmatpush1.bf16.msra.mxu0 0
        %885 = vmatprep.subr.bf16.mxu0 0
        %886 = vmatpush1.bf16.msra.mxu0 0
        %887 = vmatprep.subr.bf16.mxu0 0
        %888 = vmatpush1.bf16.msra.mxu0 0
        %889 = vmatprep.subr.bf16.mxu0 0
        %890 = vmatpush1.bf16.msra.mxu0 0
        %891 = vmatprep.subr.bf16.mxu0 0
        %892 = vmatpush1.bf16.msra.mxu0 0
        %893 = vmatprep.mubr.bf16.mxu0 0
        %894 = vmatmul.mubr.bf16.gmra.mrb[0].mxu0 %v799
        %v895 = vpop.f32.mrb[0].mxu0
        %v896 = vadd.f32 0.0, %v895
        %v897 = vpop.f32.mrb[0].mxu0
        %v898 = vpop.f32.mrb[0].mxu0
        %v899 = vadd.f32 0.0, %v898
        %v900 = vpop.f32.mrb[0].mxu0
        %901 = vmatprep.mubr.bf16.mxu0 0
        %902 = vmatmul.mubr.bf16.gmra.mrb[0].mxu0 %v800
        %v903 = vpop.f32.mrb[0].mxu0
        %v904 = vadd.f32 0.0, %v903
        %v905 = vpop.f32.mrb[0].mxu0
        %v906 = vpop.f32.mrb[0].mxu0
        %v907 = vadd.f32 0.0, %v906
        %v908 = vpop.f32.mrb[0].mxu0
        %909 = vmatprep.mubr.bf16.mxu0 0
        %910 = vmatmul.mubr.bf16.gmra.mrb[0].mxu0 %v801
        %v911 = vpop.f32.mrb[0].mxu0
        %v912 = vadd.f32 0.0, %v911
        %v913 = vpop.f32.mrb[0].mxu0
        %v914 = vpop.f32.mrb[0].mxu0
        %v915 = vadd.f32 0.0, %v914
        %v916 = vpop.f32.mrb[0].mxu0
        %917 = vmatprep.mubr.bf16.mxu0 0
        %918 = vmatmul.mubr.bf16.gmra.mrb[0].mxu0 %v802
        %v919 = vpop.f32.mrb[0].mxu0
        %v920 = vadd.f32 0.0, %v919
        %v921 = vpop.f32.mrb[0].mxu0
        %v922 = vpop.f32.mrb[0].mxu0
        %v923 = vadd.f32 0.0, %v922
        %v924 = vpop.f32.mrb[0].mxu0
        %925 = vmatprep.mubr.bf16.mxu0 0
        %926 = vmatmul.mubr.bf16.gmra.mrb[0].mxu0 %v803
        %v927 = vpop.f32.mrb[0].mxu0
        %v928 = vadd.f32 0.0, %v927
        %v929 = vpop.f32.mrb[0].mxu0
        %v930 = vpop.f32.mrb[0].mxu0
        %v931 = vadd.f32 0.0, %v930
        %v932 = vpop.f32.mrb[0].mxu0
        %933 = vmatprep.mubr.bf16.mxu0 0
        %934 = vmatmul.mubr.bf16.gmra.mrb[0].mxu0 %v804
        %v935 = vpop.f32.mrb[0].mxu0
        %v936 = vadd.f32 0.0, %v935
        %v937 = vpop.f32.mrb[0].mxu0
        %v938 = vpop.f32.mrb[0].mxu0
        %v939 = vadd.f32 0.0, %v938
        %v940 = vpop.f32.mrb[0].mxu0
        %941 = vmatprep.mubr.bf16.mxu0 0
        %942 = vmatmul.mubr.bf16.gmra.mrb[0].mxu0 %v805
        %v943 = vpop.f32.mrb[0].mxu0
        %v944 = vadd.f32 0.0, %v943
        %v945 = vpop.f32.mrb[0].mxu0
        %v946 = vpop.f32.mrb[0].mxu0
        %v947 = vadd.f32 0.0, %v946
        %v948 = vpop.f32.mrb[0].mxu0
        %949 = vdwg.mxu0
        %v950 = vadd.bf16 %v532, %v546
        %v951 = vadd.bf16 %v533, %v547
        %v952 = vadd.bf16 %v534, %v548
        %v953 = vadd.bf16 %v535, %v549
        %v954 = vadd.bf16 %v536, %v550
        %v955 = vadd.bf16 %v537, %v551
        %v956 = vadd.bf16 %v538, %v552
        %v957 = vadd.bf16 %v539, %v553
        %v958 = vadd.bf16 %v540, %v554
        %v959 = vadd.bf16 %v541, %v555
        %v960 = vadd.bf16 %v542, %v556
        %v961 = vadd.bf16 %v543, %v557
        %v962 = vadd.bf16 %v544, %v558
        %v963 = vadd.bf16 %v545, %v559
        %v964 = vld [vmem:[%s455] sm:$0xf]
        %v965 = vld [vmem:[%s455 + $0x4] sm:$0xf]
        %v966 = vld [vmem:[%s455 + $0x8] sm:$0xf]
        %v967 = vld [vmem:[%s455 + $0xc] sm:$0xf]
        %v968 = vld [vmem:[%s455 + $0x10] sm:$0xf]
        %v969 = vld [vmem:[%s455 + $0x14] sm:$0xf]
        %v970 = vld [vmem:[%s455 + $0x18] sm:$0xf]
        %v971 = vld [vmem:[%s455 + $0x1c] sm:$0xf]
        %v972 = vld [vmem:[%s455 + $0x20] sm:$0xf]
        %v973 = vld [vmem:[%s455 + $0x24] sm:$0xf]
        %v974 = vld [vmem:[%s455 + $0x28] sm:$0xf]
        %v975 = vld [vmem:[%s455 + $0x2c] sm:$0xf]
        %v976 = vld [vmem:[%s455 + $0x30] sm:$0xf]
        %v977 = vld [vmem:[%s455 + $0x34] sm:$0xf]
        %v978 = vld [vmem:[%s455 + $0x38] sm:$0xf]
        %v979 = vld [vmem:[%s455 + $0x3c] sm:$0xf]
        %v994 = vunpack.c.l.b16 %v950
        %v995 = vunpack.c.l.b16 %v951
        %v996 = vunpack.c.l.b16 %v952
        %v997 = vunpack.c.l.b16 %v953
        %v998 = vunpack.c.l.b16 %v954
        %v999 = vunpack.c.l.b16 %v955
        %v1000 = vunpack.c.l.b16 %v956
        %v1001 = vunpack.c.l.b16 %v957
        %v1002 = vunpack.c.l.b16 %v958
        %v1003 = vunpack.c.l.b16 %v959
        %v1004 = vunpack.c.l.b16 %v960
        %v1005 = vunpack.c.l.b16 %v961
        %v1006 = vunpack.c.l.b16 %v962
        %v1007 = vunpack.c.l.b16 %v963
        %v1008 = vpack.c.b16 %v995, %v994
        %v1009 = vpack.c.b16 %v997, %v996
        %v1010 = vpack.c.b16 %v999, %v998
        %v1011 = vpack.c.b16 %v1001, %v1000
        %v1012 = vpack.c.b16 %v1003, %v1002
        %v1013 = vpack.c.b16 %v1005, %v1004
        %v1014 = vpack.c.b16 %v1007, %v1006
        %v1038 = vunpack.c.l.b16 %v964
        %v1039 = vunpack.c.l.b16 %v965
        %v1040 = vunpack.c.l.b16 %v966
        %v1041 = vunpack.c.l.b16 %v967
        %v1042 = vunpack.c.l.b16 %v968
        %v1043 = vunpack.c.l.b16 %v969
        %v1044 = vunpack.c.l.b16 %v970
        %v1045 = vunpack.c.l.b16 %v971
        %v1046 = vunpack.c.l.b16 %v972
        %v1047 = vunpack.c.l.b16 %v973
        %v1048 = vunpack.c.l.b16 %v974
        %v1049 = vunpack.c.l.b16 %v975
        %v1050 = vunpack.c.l.b16 %v976
        %v1051 = vunpack.c.l.b16 %v977
        %v1052 = vunpack.c.l.b16 %v978
        %v1053 = vunpack.c.l.b16 %v979
        %v1054 = vpack.c.b16 %v1039, %v1038
        %v1055 = vpack.c.b16 %v1041, %v1040
        %v1056 = vpack.c.b16 %v1043, %v1042
        %v1057 = vpack.c.b16 %v1045, %v1044
        %v1058 = vpack.c.b16 %v1047, %v1046
        %v1059 = vpack.c.b16 %v1049, %v1048
        %v1060 = vpack.c.b16 %v1051, %v1050
        %v1061 = vpack.c.b16 %v1053, %v1052
        %1070 = vmatprep.subr.bf16.mxu0 0
        %1071 = vmatpush1.bf16.msra.mxu0 %v1054
        %1072 = vmatprep.subr.bf16.mxu0 0
        %1073 = vmatpush1.bf16.msra.mxu0 %v1055
        %1074 = vmatprep.subr.bf16.mxu0 0
        %1075 = vmatpush1.bf16.msra.mxu0 %v1056
        %1076 = vmatprep.subr.bf16.mxu0 0
        %1077 = vmatpush1.bf16.msra.mxu0 %v1057
        %1078 = vmatprep.subr.bf16.mxu0 0
        %1079 = vmatpush1.bf16.msra.mxu0 %v1058
        %1080 = vmatprep.subr.bf16.mxu0 0
        %1081 = vmatpush1.bf16.msra.mxu0 %v1059
        %1082 = vmatprep.subr.bf16.mxu0 0
        %1083 = vmatpush1.bf16.msra.mxu0 %v1060
        %1084 = vmatprep.subr.bf16.mxu0 0
        %1085 = vmatpush1.bf16.msra.mxu0 %v1061
        %1086 = vmatprep.subr.bf16.mxu0 0
        %1087 = vmatpush1.bf16.msra.mxu0 0
        %1088 = vmatprep.subr.bf16.mxu0 0
        %1089 = vmatpush1.bf16.msra.mxu0 0
        %1090 = vmatprep.subr.bf16.mxu0 0
        %1091 = vmatpush1.bf16.msra.mxu0 0
        %1092 = vmatprep.subr.bf16.mxu0 0
        %1093 = vmatpush1.bf16.msra.mxu0 0
        %1094 = vmatprep.subr.bf16.mxu0 0
        %1095 = vmatpush1.bf16.msra.mxu0 0
        %1096 = vmatprep.subr.bf16.mxu0 0
        %1097 = vmatpush1.bf16.msra.mxu0 0
        %1098 = vmatprep.subr.bf16.mxu0 0
        %1099 = vmatpush1.bf16.msra.mxu0 0
        %1100 = vmatprep.subr.bf16.mxu0 0
        %1101 = vmatpush1.bf16.msra.mxu0 0
        %1102 = vmatprep.mubr.bf16.mxu0 0
        %1103 = vmatmul.mubr.bf16.gmra.mrb[0].mxu0 %v1008
        %v1104 = vpop.f32.mrb[0].mxu0
        %v1105 = vadd.f32 0.0, %v1104
        %v1106 = vpop.f32.mrb[0].mxu0
        %v1107 = vpop.f32.mrb[0].mxu0
        %v1108 = vadd.f32 0.0, %v1107
        %v1109 = vpop.f32.mrb[0].mxu0
        %1110 = vmatprep.mubr.bf16.mxu0 0
        %1111 = vmatmul.mubr.bf16.gmra.mrb[0].mxu0 %v1009
        %v1112 = vpop.f32.mrb[0].mxu0
        %v1113 = vadd.f32 0.0, %v1112
        %v1114 = vpop.f32.mrb[0].mxu0
        %v1115 = vpop.f32.mrb[0].mxu0
        %v1116 = vadd.f32 0.0, %v1115
        %v1117 = vpop.f32.mrb[0].mxu0
        %1118 = vmatprep.mubr.bf16.mxu0 0
        %1119 = vmatmul.mubr.bf16.gmra.mrb[0].mxu0 %v1010
        %v1120 = vpop.f32.mrb[0].mxu0
        %v1121 = vadd.f32 0.0, %v1120
        %v1122 = vpop.f32.mrb[0].mxu0
        %v1123 = vpop.f32.mrb[0].mxu0
        %v1124 = vadd.f32 0.0, %v1123
        %v1125 = vpop.f32.mrb[0].mxu0
        %1126 = vmatprep.mubr.bf16.mxu0 0
        %1127 = vmatmul.mubr.bf16.gmra.mrb[0].mxu0 %v1011
        %v1128 = vpop.f32.mrb[0].mxu0
        %v1129 = vadd.f32 0.0, %v1128
        %v1130 = vpop.f32.mrb[0].mxu0
        %v1131 = vpop.f32.mrb[0].mxu0
        %v1132 = vadd.f32 0.0, %v1131
        %v1133 = vpop.f32.mrb[0].mxu0
        %1134 = vmatprep.mubr.bf16.mxu0 0
        %1135 = vmatmul.mubr.bf16.gmra.mrb[0].mxu0 %v1012
        %v1136 = vpop.f32.mrb[0].mxu0
        %v1137 = vadd.f32 0.0, %v1136
        %v1138 = vpop.f32.mrb[0].mxu0
        %v1139 = vpop.f32.mrb[0].mxu0
        %v1140 = vadd.f32 0.0, %v1139
        %v1141 = vpop.f32.mrb[0].mxu0
        %1142 = vmatprep.mubr.bf16.mxu0 0
        %1143 = vmatmul.mubr.bf16.gmra.mrb[0].mxu0 %v1013
        %v1144 = vpop.f32.mrb[0].mxu0
        %v1145 = vadd.f32 0.0, %v1144
        %v1146 = vpop.f32.mrb[0].mxu0
        %v1147 = vpop.f32.mrb[0].mxu0
        %v1148 = vadd.f32 0.0, %v1147
        %v1149 = vpop.f32.mrb[0].mxu0
        %1150 = vmatprep.mubr.bf16.mxu0 0
        %1151 = vmatmul.mubr.bf16.gmra.mrb[0].mxu0 %v1014
        %v1152 = vpop.f32.mrb[0].mxu0
        %v1153 = vadd.f32 0.0, %v1152
        %v1154 = vpop.f32.mrb[0].mxu0
        %v1155 = vpop.f32.mrb[0].mxu0
        %v1156 = vadd.f32 0.0, %v1155
        %v1157 = vpop.f32.mrb[0].mxu0
        %1158 = vdwg.mxu0
        %v1159 = vsub.f32 %v701, %v896
        %v1160 = vsub.f32 %v704, %v899
        %v1161 = vsub.f32 %v709, %v904
        %v1162 = vsub.f32 %v712, %v907
        %v1163 = vsub.f32 %v717, %v912
        %v1164 = vsub.f32 %v720, %v915
        %v1165 = vsub.f32 %v725, %v920
        %v1166 = vsub.f32 %v728, %v923
        %v1167 = vsub.f32 %v733, %v928
        %v1168 = vsub.f32 %v736, %v931
        %v1169 = vsub.f32 %v741, %v936
        %v1170 = vsub.f32 %v744, %v939
        %v1171 = vsub.f32 %v749, %v944
        %v1172 = vsub.f32 %v752, %v947
        %v1173 = vld [vmem:[%s463] sm:$0x1]
        %v1175 = vlaneseq
        %v1176 = vshrl.u32 %v1175, 7
        %v1177 = vsub.s32 0, %v1176
        %v1178 = vrot.slane %v1173, %v1177
        %v1180 = vadd.f32 %v1159, %v1178
        %v1181 = vadd.f32 %v1160, %v1178
        %v1182 = vadd.f32 %v1161, %v1178
        %v1183 = vadd.f32 %v1162, %v1178
        %v1184 = vadd.f32 %v1163, %v1178
        %v1185 = vadd.f32 %v1164, %v1178
        %v1186 = vadd.f32 %v1165, %v1178
        %v1187 = vadd.f32 %v1166, %v1178
        %v1188 = vadd.f32 %v1167, %v1178
        %v1189 = vadd.f32 %v1168, %v1178
        %v1190 = vadd.f32 %v1169, %v1178
        %v1191 = vadd.f32 %v1170, %v1178
        %v1192 = vadd.f32 %v1171, %v1178
        %v1193 = vadd.f32 %v1172, %v1178
        %v1194 = vsub.f32 %v1105, %v701
        %v1195 = vsub.f32 %v1108, %v704
        %v1196 = vsub.f32 %v1113, %v709
        %v1197 = vsub.f32 %v1116, %v712
        %v1198 = vsub.f32 %v1121, %v717
        %v1199 = vsub.f32 %v1124, %v720
        %v1200 = vsub.f32 %v1129, %v725
        %v1201 = vsub.f32 %v1132, %v728
        %v1202 = vsub.f32 %v1137, %v733
        %v1203 = vsub.f32 %v1140, %v736
        %v1204 = vsub.f32 %v1145, %v741
        %v1205 = vsub.f32 %v1148, %v744
        %v1206 = vsub.f32 %v1153, %v749
        %v1207 = vsub.f32 %v1156, %v752
        %v1208 = vsub.f32 %v1194, %v896
        %v1209 = vsub.f32 %v1195, %v899
        %v1210 = vsub.f32 %v1196, %v904
        %v1211 = vsub.f32 %v1197, %v907
        %v1212 = vsub.f32 %v1198, %v912
        %v1213 = vsub.f32 %v1199, %v915
        %v1214 = vsub.f32 %v1200, %v920
        %v1215 = vsub.f32 %v1201, %v923
        %v1216 = vsub.f32 %v1202, %v928
        %v1217 = vsub.f32 %v1203, %v931
        %v1218 = vsub.f32 %v1204, %v936
        %v1219 = vsub.f32 %v1205, %v939
        %v1220 = vsub.f32 %v1206, %v944
        %v1221 = vsub.f32 %v1207, %v947
        %v1222 = vld [vmem:[%s471] sm:$0x1]
        %v1224 = vlaneseq
        %v1225 = vshrl.u32 %v1224, 7
        %v1226 = vsub.s32 0, %v1225
        %v1227 = vrot.slane %v1222, %v1226
        %v1229 = vadd.f32 %v1208, %v1227
        %v1230 = vadd.f32 %v1209, %v1227
        %v1231 = vadd.f32 %v1210, %v1227
        %v1232 = vadd.f32 %v1211, %v1227
        %v1233 = vadd.f32 %v1212, %v1227
        %v1234 = vadd.f32 %v1213, %v1227
        %v1235 = vadd.f32 %v1214, %v1227
        %v1236 = vadd.f32 %v1215, %v1227
        %v1237 = vadd.f32 %v1216, %v1227
        %v1238 = vadd.f32 %v1217, %v1227
        %v1239 = vadd.f32 %v1218, %v1227
        %v1240 = vadd.f32 %v1219, %v1227
        %v1241 = vadd.f32 %v1220, %v1227
        %v1242 = vadd.f32 %v1221, %v1227
        %v1243 = vmax.f32 %v1180, 0.0
        %v1244 = vmax.f32 %v1181, 0.0
        %v1245 = vmax.f32 %v1182, 0.0
        %v1246 = vmax.f32 %v1183, 0.0
        %v1247 = vmax.f32 %v1184, 0.0
        %v1248 = vmax.f32 %v1185, 0.0
        %v1249 = vmax.f32 %v1186, 0.0
        %v1250 = vmax.f32 %v1187, 0.0
        %v1251 = vmax.f32 %v1188, 0.0
        %v1252 = vmax.f32 %v1189, 0.0
        %v1253 = vmax.f32 %v1190, 0.0
        %v1254 = vmax.f32 %v1191, 0.0
        %v1255 = vmax.f32 %v1192, 0.0
        %v1256 = vmax.f32 %v1193, 0.0
        %1257 = vst [vmem:[%s519] sm:$0xff] %v1243
        %1258 = vst [vmem:[%s519 + $0x8] sm:$0xff] %v1244
        %1259 = vst [vmem:[%s519 + $0x10] sm:$0xff] %v1245
        %1260 = vst [vmem:[%s519 + $0x18] sm:$0xff] %v1246
        %1261 = vst [vmem:[%s519 + $0x20] sm:$0xff] %v1247
        %1262 = vst [vmem:[%s519 + $0x28] sm:$0xff] %v1248
        %1263 = vst [vmem:[%s519 + $0x30] sm:$0xff] %v1249
        %1264 = vst [vmem:[%s519 + $0x38] sm:$0xff] %v1250
        %1265 = vst [vmem:[%s519 + $0x40] sm:$0xff] %v1251
        %1266 = vst [vmem:[%s519 + $0x48] sm:$0xff] %v1252
        %1267 = vst [vmem:[%s519 + $0x50] sm:$0xff] %v1253
        %1268 = vst [vmem:[%s519 + $0x58] sm:$0xff] %v1254
        %1269 = vst [vmem:[%s519 + $0x60] sm:$0xff] %v1255
        %1270 = vst [vmem:[%s519 + $0x68] sm:$0xff] %v1256
        %v1271 = vmax.f32 %v1229, 0.0
        %v1272 = vmax.f32 %v1230, 0.0
        %v1273 = vmax.f32 %v1231, 0.0
        %v1274 = vmax.f32 %v1232, 0.0
        %v1275 = vmax.f32 %v1233, 0.0
        %v1276 = vmax.f32 %v1234, 0.0
        %v1277 = vmax.f32 %v1235, 0.0
        %v1278 = vmax.f32 %v1236, 0.0
        %v1279 = vmax.f32 %v1237, 0.0
        %v1280 = vmax.f32 %v1238, 0.0
        %v1281 = vmax.f32 %v1239, 0.0
        %v1282 = vmax.f32 %v1240, 0.0
        %v1283 = vmax.f32 %v1241, 0.0
        %v1284 = vmax.f32 %v1242, 0.0
        %1285 = vst [vmem:[%s526] sm:$0xff] %v1271
        %1286 = vst [vmem:[%s526 + $0x8] sm:$0xff] %v1272
        %1287 = vst [vmem:[%s526 + $0x10] sm:$0xff] %v1273
        %1288 = vst [vmem:[%s526 + $0x18] sm:$0xff] %v1274
        %1289 = vst [vmem:[%s526 + $0x20] sm:$0xff] %v1275
        %1290 = vst [vmem:[%s526 + $0x28] sm:$0xff] %v1276
        %1291 = vst [vmem:[%s526 + $0x30] sm:$0xff] %v1277
        %1292 = vst [vmem:[%s526 + $0x38] sm:$0xff] %v1278
        %1293 = vst [vmem:[%s526 + $0x40] sm:$0xff] %v1279
        %1294 = vst [vmem:[%s526 + $0x48] sm:$0xff] %v1280
        %1295 = vst [vmem:[%s526 + $0x50] sm:$0xff] %v1281
        %1296 = vst [vmem:[%s526 + $0x58] sm:$0xff] %v1282
        %1297 = vst [vmem:[%s526 + $0x60] sm:$0xff] %v1283
        %1298 = vst [vmem:[%s526 + $0x68] sm:$0xff] %v1284
        %s1299 = sand.u32 %s232, 1
        %s1300 = scalar_lea.sflag [#allocation4], %s1299
        %s1301 = sand.u32 %s232, 1
        %s1302 = smul.addr %s1301, 112
        %s1303 = scalar_lea.vmem [#allocation12], %s1302
        %s1304 = sand.u32 %s260, 1
        %s1305 = scalar_lea.sflag [#allocation14], %s1304
        %s1306 = sand.u32 %s260, 1
        %s1307 = smul.addr %s1306, 112
        %s1308 = scalar_lea.vmem [#allocation13], %s1307
        // Predicated region
        $region77: #{tpu_custom_call.1} parent=47 // pred_check
          %p1309 = pneg %p242
        $region78: #{tpu_custom_call.1} parent=47 // pred_check_branch
          %1311 = sbr.rel (%p1309) target = $region80
        $region79: #{tpu_custom_call.1} parent=47 // pred_region
          %s1312 = smul.u32 14, %s32
          %s1314 = ssub.s32 1792, 1792
          %1315 = vsyncadd %s1300, %s1314
          %s1316 = smul.addr %s1312, 3
          %s1317 = sadd.s32 %s33, %s1316
          %s1318 = smul.addr %s1317, 128
          %s1319 = scalar_lea.hbm %s7, %s1318
          %s1320 = sshll.u32 %s1303, 4
          %s1321 = int_to_ptr.vmem [resolvable:$true] %s1320
          %1326 = dma.vmem_to_hbm [thread:$0]  %s1321, 1792, %s1319, %s1300, 128, 384, 8
        $region80: #{tpu_custom_call.1} parent=47 // pred_fallthru
          _
        // Predicated region
        $region81: #{tpu_custom_call.1} parent=47 // pred_check
          %p1327 = pneg %p270
        $region82: #{tpu_custom_call.1} parent=47 // pred_check_branch
          %1329 = sbr.rel (%p1327) target = $region84
        $region83: #{tpu_custom_call.1} parent=47 // pred_region
          %s1330 = smul.u32 14, %s32
          %s1332 = ssub.s32 1792, 1792
          %1333 = vsyncadd %s1305, %s1332
          %s1334 = smul.addr %s1330, 3
          %s1335 = sadd.s32 %s33, %s1334
          %s1336 = smul.addr %s1335, 128
          %s1337 = scalar_lea.hbm %s8, %s1336
          %s1338 = sshll.u32 %s1308, 4
          %s1339 = int_to_ptr.vmem [resolvable:$true] %s1338
          %1344 = dma.vmem_to_hbm [thread:$0]  %s1339, 1792, %s1337, %s1305, 128, 384, 8
        $region84: #{tpu_custom_call.1} parent=47 // pred_fallthru
          _
      $region48: #{tpu_custom_call.1} parent=5 // pred_fallthru
        _
      %p1345 = scmp.le.s32.totalorder 2, %s23
      // Predicated region
      $region85: #{tpu_custom_call.1} parent=5 // pred_check
        %p1346 = pneg %p1345
      $region86: #{tpu_custom_call.1} parent=5 // pred_check_branch
        %1348 = sbr.rel (%p1346) target = $region88
      $region87: #{tpu_custom_call.1} parent=5 // pred_region
        %s1349 = ssub.s32 %s23, 2
        // Predicated region
        $region89: #{tpu_custom_call.1} parent=87 // pred_check
          %p1350 = pneg %p248
        $region90: #{tpu_custom_call.1} parent=87 // pred_check_branch
          %1352 = sbr.rel (%p1350) target = $region92
        $region91: #{tpu_custom_call.1} parent=87 // pred_region
          %s1353 = sand.u32 %s233, 1
          %s1354 = scalar_lea.sflag [#allocation4], %s1353
          %s1355 = sand.u32 %s233, 1
          %s1356 = smul.addr %s1355, 112
          %s1357 = scalar_lea.vmem [#allocation12], %s1356
          %1358 = dma.done %s1354, 1792
        $region92: #{tpu_custom_call.1} parent=87 // pred_fallthru
          _
        // Predicated region
        $region93: #{tpu_custom_call.1} parent=87 // pred_check
          %p1359 = pneg %p276
        $region94: #{tpu_custom_call.1} parent=87 // pred_check_branch
          %1361 = sbr.rel (%p1359) target = $region96
        $region95: #{tpu_custom_call.1} parent=87 // pred_region
          %s1362 = sand.u32 %s261, 1
          %s1363 = scalar_lea.sflag [#allocation14], %s1362
          %s1364 = sand.u32 %s261, 1
          %s1365 = smul.addr %s1364, 112
          %s1366 = scalar_lea.vmem [#allocation13], %s1365
          %1367 = dma.done %s1363, 1792
        $region96: #{tpu_custom_call.1} parent=87 // pred_fallthru
          _
      $region88: #{tpu_custom_call.1} parent=5 // pred_fallthru
        _
    $region6: #{tpu_custom_call.1} parent=1 // loop_footer
      %s27 = sadd.s32 1, %s23
    $region7: #{tpu_custom_call.1} parent=1 // loop_footer_branch
      %22 = sbr.rel target = $region3
    $region8: #{tpu_custom_call.1} parent=1 // loop_exit
      _
    %1368 = vsyncpa [#allocation3], 1
    %s1369 = scalar_lea.sflag [#allocation3], 1
    %1370 = vsyncpa %s1369, 1
    %1371 = vsyncpa [#allocation6], 1
    %1372 = vsyncpa [#allocation4], 1
    %s1373 = scalar_lea.sflag [#allocation4], 1
    %1374 = vsyncpa %s1373, 1
    %1375 = vsyncpa [#allocation14], 1
    %s1376 = scalar_lea.sflag [#allocation14], 1
    %1377 = vsyncpa %s1376, 1

</llo_original>
